<compile_context>
chip_gen: v6e
topology: v6e:2x2x1
jax: 0.10.0
libtpu: 0.0.40
codegen_flags: <defaults>
</compile_context>

<pallas_src>
import jax
import jax.numpy as jnp
from jax import lax
from jax.experimental import pallas as pl
from jax.experimental.pallas import tpu as pltpu

NUM_CLASSES = 24
NUM_CUTS = 12
C_IN = 3
C_FEAT = 32
H = W = 16

K_PAD = 32      # 3*3*C_IN = 27 padded to a sublane-friendly 32
NC_PAD = 128    # classifier output padded to one full lane tile


def _make_kernel(tb, v, hw):
    mhw = tb * hw   # lane width of one view across all items in the step

    def kernel(x_ref, wct_ref, bc_ref, wf_ref, bf_ref, o_ref):
        # x_ref  : (1, K_PAD, v*tb*hw) bf16  im2col patches, view-major lanes
        # wct_ref: (C_FEAT, K_PAD)     bf16  conv weight, transposed
        # bc_ref : (C_FEAT, 1)         f32   conv bias
        # wf_ref : (C_FEAT, NC_PAD)    f32   classifier weight (lane-padded)
        # bf_ref : (1, NC_PAD)         f32   classifier bias   (lane-padded)
        # o_ref  : (1, tb, NC_PAD)     f32
        xb = x_ref[0]                                        # (Kp, v*tb*hw)

        # Single im2col matmul: (Cf, Kp) x (Kp, v*tb*hw) -> f32 accumulate.
        feat = jnp.dot(wct_ref[...], xb, preferred_element_type=jnp.float32)
        feat = jnp.maximum(feat + bc_ref[...], 0.0)          # bias + ReLU (f32)

        # torch.max(y, 1)[0]: max over the NUM_CUTS views for all tb items at
        # once.  View slices sit at 128-aligned lane offsets (mhw = tb*256);
        # log-depth tree keeps the VPU dependency chain short.
        parts = [feat[:, view * mhw:(view + 1) * mhw] for view in range(v)]
        while len(parts) > 1:
            nxt = []
            for i in range(0, len(parts) - 1, 2):
                nxt.append(jnp.maximum(parts[i], parts[i + 1]))
            if len(parts) % 2:
                nxt.append(parts[-1])
            parts = nxt
        vm = parts[0]                                        # (Cf, tb*hw) f32

        wf = wf_ref[...]
        bf = bf_ref[...]
        inv_hw = 1.0 / hw
        rows = []
        for t in range(tb):
            # AdaptiveAvgPool2d((1,1)): mean over the hw pixels (lane reduce,
            # 128-aligned slice).
            gap = jnp.sum(vm[:, t * hw:(t + 1) * hw], axis=1,
                          keepdims=True) * inv_hw            # (Cf, 1) f32
            # classifier: (1,Cf)@(Cf,NC) done as bcast-mul + sublane-sum
            # (avoids an M=1 MXU matmul per item).
            rows.append(jnp.sum(wf * gap, axis=0, keepdims=True) + bf)
        logits = rows[0] if tb == 1 else jnp.concatenate(rows, axis=0)
        o_ref[0] = logits                                    # (tb, NC_PAD)

    return kernel


def mcnn_forward(x, params, *, batch_tile=None):
    """x: (B, NUM_CUTS, 3, H, W) float32 (PyTorch layout) -> (B, NUM_CLASSES)."""
    B, V, Cin, Hh, Ww = x.shape
    wc, bc, wf, bf = params
    Cf = wc.shape[-1]
    NC = wf.shape[-1]
    K = 3 * 3 * Cin
    HW = Hh * Ww
    M = V * HW

    if batch_tile is None:
        # Keep >= 2 grid steps (both v7x TensorCores get work); cap TB for VMEM.
        batch_tile = max(1, min(8, B // 2))
    TB = batch_tile
    n_steps = pl.cdiv(B, TB)
    Bp = n_steps * TB
    if Bp != B:
        x = jnp.pad(x, ((0, Bp - B), (0, 0), (0, 0), (0, 0), (0, 0)))

    # ---- plain-JAX glue: im2col patch slab, lane-dense + view-major --------
    x_nhwc = jnp.transpose(x, (0, 1, 3, 4, 2))                      # (Bp,V,H,W,Cin)
    x_pad = jnp.pad(x_nhwc, ((0, 0), (0, 0), (1, 1), (1, 1), (0, 0)))
    taps = []
    for dy in range(3):
        for dx in range(3):
            taps.append(x_pad[:, :, dy:dy + Hh, dx:dx + Ww, :])
    patches = jnp.stack(taps, axis=4)                               # (Bp,V,H,W,9,Cin)
    patches = patches.reshape(Bp, M, K)                             # k=(dy*3+dx)*Cin+cin
    patches = jnp.transpose(patches, (0, 2, 1))                     # (Bp, K, V*HW)
    patches = jnp.pad(patches, ((0, 0), (0, K_PAD - K), (0, 0)))
    patches = patches.reshape(n_steps, TB, K_PAD, V, HW)
    # view-major lanes inside a step: col = view*(TB*HW) + item*HW + pixel
    patches = jnp.transpose(patches, (0, 2, 3, 1, 4))
    patches = patches.reshape(n_steps, K_PAD, V * TB * HW)
    patches = patches.astype(jnp.bfloat16)                          # bf16 MXU feed

    # conv weight: (3,3,Cin,Cf) -> (Cf, K_PAD) bf16 ; biases / classifier in f32
    wct = jnp.pad(wc.reshape(K, Cf).T, ((0, 0), (0, K_PAD - K))).astype(jnp.bfloat16)
    bc2 = bc.reshape(Cf, 1).astype(jnp.float32)
    wf_p = jnp.pad(wf, ((0, 0), (0, NC_PAD - NC))).astype(jnp.float32)
    bf_p = jnp.pad(bf, ((0, 0), (0, NC_PAD - NC))).astype(jnp.float32)

    kernel = _make_kernel(TB, V, HW)
    out = pl.pallas_call(
        kernel,
        out_shape=jax.ShapeDtypeStruct((n_steps, TB, NC_PAD), jnp.float32),
        grid_spec=pltpu.PrefetchScalarGridSpec(
            num_scalar_prefetch=0,
            grid=(n_steps,),
            in_specs=[
                pl.BlockSpec((1, K_PAD, V * TB * HW), lambda i: (i, 0, 0)),
                pl.BlockSpec((Cf, K_PAD), lambda i: (0, 0)),
                pl.BlockSpec((Cf, 1), lambda i: (0, 0)),
                pl.BlockSpec((Cf, NC_PAD), lambda i: (0, 0)),
                pl.BlockSpec((1, NC_PAD), lambda i: (0, 0)),
            ],
            out_specs=pl.BlockSpec((1, TB, NC_PAD), lambda i: (i, 0, 0)),
        ),
        compiler_params=pltpu.CompilerParams(
            dimension_semantics=("parallel",)),
    )(patches, wct, bc2, wf_p, bf_p)

    return out.reshape(Bp, NC_PAD)[:B, :NC]


def init_params(key, c_in=C_IN, c_feat=C_FEAT, num_classes=NUM_CLASSES):
    k1, k2, k3, k4 = jax.random.split(key, 4)
    wc = 0.1 * jax.random.normal(k1, (3, 3, c_in, c_feat), jnp.float32)
    bc = 0.1 * jax.random.normal(k2, (1, c_feat), jnp.float32)
    wf = 0.1 * jax.random.normal(k3, (c_feat, num_classes), jnp.float32)
    bf = 0.1 * jax.random.normal(k4, (1, num_classes), jnp.float32)
    return wc, bc, wf, bf


def mcnn_reference(x, params):
    """Pure-JAX reference mirroring the PyTorch forward (NCHW, f32 math)."""
    B, V, Cin, Hh, Ww = x.shape
    wc, bc, wf, bf = params
    xf = x.reshape(B * V, Cin, Hh, Ww)
    y = lax.conv_general_dilated(
        xf, wc, window_strides=(1, 1), padding="SAME",
        dimension_numbers=("NCHW", "HWIO", "NCHW"),
        precision=lax.Precision.HIGHEST)
    y = jnp.maximum(y + bc[0][None, :, None, None], 0.0)
    y = y.reshape(B, V, -1, Hh, Ww)
    y = jnp.max(y, axis=1)                 # max over cuts
    y = jnp.mean(y, axis=(2, 3))            # AdaptiveAvgPool2d((1,1)) + flatten
    return jnp.dot(y, wf, precision=lax.Precision.HIGHEST) + bf


if __name__ == "__main__":
    key = jax.random.PRNGKey(0)
    kx, kp = jax.random.split(key)

    B = 2
    x = jax.random.normal(kx, (B, NUM_CUTS, C_IN, H, W), jnp.float32)
    params = init_params(kp)

    out = jax.jit(mcnn_forward)(x, params)
    out = jax.block_until_ready(out)

    # Reference computed on the same bf16-rounded x / conv weight that the
    # kernel's MXU feed sees; all accumulation is f32 in both paths.
    wc, bc, wf, bf = params
    x_r = x.astype(jnp.bfloat16).astype(jnp.float32)
    wc_r = wc.astype(jnp.bfloat16).astype(jnp.float32)
    ref = jax.block_until_ready(mcnn_reference(x_r, (wc_r, bc, wf, bf)))

    assert out.shape == (B, NUM_CLASSES), out.shape
    max_err = float(jnp.max(jnp.abs(out - ref)))
    assert jnp.allclose(out, ref, atol=1e-3, rtol=1e-3), max_err

    print("KERNEL_OK")
</pallas_src>

<mosaic_0001>
module attributes {stable_mosaic.version = 11 : i64} {
  func.func @kernel(%arg0: i32, %arg1: memref<1x32x3072xbf16, #tpu.memory_space<vmem>>, %arg2: memref<32x32xbf16, #tpu.memory_space<vmem>>, %arg3: memref<32x1xf32, #tpu.memory_space<vmem>>, %arg4: memref<32x128xf32, #tpu.memory_space<vmem>>, %arg5: memref<1x128xf32, #tpu.memory_space<vmem>>, %arg6: memref<1x1x128xf32, #tpu.memory_space<vmem>>) attributes {dimension_semantics = [#tpu.dimension_semantics<parallel>], iteration_bounds = array<i64: 2>, scalar_prefetch = 0 : i64, scratch_operands = 0 : i64, tpu.core_type = #tpu.core_type<tc>, window_params = [{transform_indices = @transform_0, window_bounds = array<i64: 1, 32, 3072>}, {pipeline_mode = #tpu.pipeline_mode<synchronous>, transform_indices = @transform_1, window_bounds = array<i64: 32, 32>}, {pipeline_mode = #tpu.pipeline_mode<synchronous>, transform_indices = @transform_2, window_bounds = array<i64: 32, 1>}, {pipeline_mode = #tpu.pipeline_mode<synchronous>, transform_indices = @transform_3, window_bounds = array<i64: 32, 128>}, {pipeline_mode = #tpu.pipeline_mode<synchronous>, transform_indices = @transform_4, window_bounds = array<i64: 1, 128>}, {transform_indices = @transform_5, window_bounds = array<i64: 1, 1, 128>}]} {
    %c0 = arith.constant 0 : index
    %c0_0 = arith.constant 0 : index
    %c0_1 = arith.constant 0 : index
    %0 = vector.load %arg1[%c0, %c0_0, %c0_1] : memref<1x32x3072xbf16, #tpu.memory_space<vmem>>, vector<1x32x3072xbf16>
    %1 = vector.shape_cast %0 : vector<1x32x3072xbf16> to vector<32x3072xbf16>
    %c0_2 = arith.constant 0 : index
    %c0_3 = arith.constant 0 : index
    %2 = vector.load %arg2[%c0_2, %c0_3] : memref<32x32xbf16, #tpu.memory_space<vmem>>, vector<32x32xbf16>
    %cst = arith.constant dense<0.000000e+00> : vector<32x3072xf32>
    %3 = tpu.matmul %2, %1, %cst {dimension_numbers = #tpu.dot_dimension_numbers<[1], [0], [0], [1], [0, 0, 1, 1], [], []>} : vector<32x32xbf16>, vector<32x3072xbf16>, vector<32x3072xf32> -> vector<32x3072xf32>
    %c0_4 = arith.constant 0 : index
    %c0_5 = arith.constant 0 : index
    %4 = vector.load %arg3[%c0_4, %c0_5] : memref<32x1xf32, #tpu.memory_space<vmem>>, vector<32x1xf32>
    %5 = vector.broadcast %4 : vector<32x1xf32> to vector<32x3072xf32>
    %6 = arith.addf %3, %5 : vector<32x3072xf32>
    %cst_6 = arith.constant 0.000000e+00 : f32
    %7 = vector.broadcast %cst_6 : f32 to vector<32x3072xf32>
    %8 = arith.maximumf %6, %7 : vector<32x3072xf32>
    %9 = vector.extract_strided_slice %8 {offsets = [0, 0], sizes = [32, 256], strides = [1, 1]} : vector<32x3072xf32> to vector<32x256xf32>
    %10 = vector.extract_strided_slice %8 {offsets = [0, 256], sizes = [32, 256], strides = [1, 1]} : vector<32x3072xf32> to vector<32x256xf32>
    %11 = vector.extract_strided_slice %8 {offsets = [0, 512], sizes = [32, 256], strides = [1, 1]} : vector<32x3072xf32> to vector<32x256xf32>
    %12 = vector.extract_strided_slice %8 {offsets = [0, 768], sizes = [32, 256], strides = [1, 1]} : vector<32x3072xf32> to vector<32x256xf32>
    %13 = vector.extract_strided_slice %8 {offsets = [0, 1024], sizes = [32, 256], strides = [1, 1]} : vector<32x3072xf32> to vector<32x256xf32>
    %14 = vector.extract_strided_slice %8 {offsets = [0, 1280], sizes = [32, 256], strides = [1, 1]} : vector<32x3072xf32> to vector<32x256xf32>
    %15 = vector.extract_strided_slice %8 {offsets = [0, 1536], sizes = [32, 256], strides = [1, 1]} : vector<32x3072xf32> to vector<32x256xf32>
    %16 = vector.extract_strided_slice %8 {offsets = [0, 1792], sizes = [32, 256], strides = [1, 1]} : vector<32x3072xf32> to vector<32x256xf32>
    %17 = vector.extract_strided_slice %8 {offsets = [0, 2048], sizes = [32, 256], strides = [1, 1]} : vector<32x3072xf32> to vector<32x256xf32>
    %18 = vector.extract_strided_slice %8 {offsets = [0, 2304], sizes = [32, 256], strides = [1, 1]} : vector<32x3072xf32> to vector<32x256xf32>
    %19 = vector.extract_strided_slice %8 {offsets = [0, 2560], sizes = [32, 256], strides = [1, 1]} : vector<32x3072xf32> to vector<32x256xf32>
    %20 = vector.extract_strided_slice %8 {offsets = [0, 2816], sizes = [32, 256], strides = [1, 1]} : vector<32x3072xf32> to vector<32x256xf32>
    %21 = arith.maximumf %9, %10 : vector<32x256xf32>
    %22 = arith.maximumf %11, %12 : vector<32x256xf32>
    %23 = arith.maximumf %13, %14 : vector<32x256xf32>
    %24 = arith.maximumf %15, %16 : vector<32x256xf32>
    %25 = arith.maximumf %17, %18 : vector<32x256xf32>
    %26 = arith.maximumf %19, %20 : vector<32x256xf32>
    %27 = arith.maximumf %21, %22 : vector<32x256xf32>
    %28 = arith.maximumf %23, %24 : vector<32x256xf32>
    %29 = arith.maximumf %25, %26 : vector<32x256xf32>
    %30 = arith.maximumf %27, %28 : vector<32x256xf32>
    %31 = arith.maximumf %30, %29 : vector<32x256xf32>
    %c0_7 = arith.constant 0 : index
    %c0_8 = arith.constant 0 : index
    %32 = vector.load %arg4[%c0_7, %c0_8] : memref<32x128xf32, #tpu.memory_space<vmem>>, vector<32x128xf32>
    %c0_9 = arith.constant 0 : index
    %c0_10 = arith.constant 0 : index
    %33 = vector.load %arg5[%c0_9, %c0_10] : memref<1x128xf32, #tpu.memory_space<vmem>>, vector<1x128xf32>
    %cst_11 = arith.constant dense<0.000000e+00> : vector<32xf32>
    %34 = vector.multi_reduction <add>, %31, %cst_11 [1] : vector<32x256xf32> to vector<32xf32>
    %35 = vector.shape_cast %34 : vector<32xf32> to vector<32x1xf32>
    %cst_12 = arith.constant 3.906250e-03 : f32
    %36 = vector.broadcast %cst_12 : f32 to vector<32x1xf32>
    %37 = arith.mulf %35, %36 : vector<32x1xf32>
    %38 = vector.broadcast %37 : vector<32x1xf32> to vector<32x128xf32>
    %39 = arith.mulf %32, %38 : vector<32x128xf32>
    %cst_13 = arith.constant dense<0.000000e+00> : vector<128xf32>
    %40 = vector.multi_reduction <add>, %39, %cst_13 [0] : vector<32x128xf32> to vector<128xf32>
    %41 = vector.shape_cast %40 : vector<128xf32> to vector<1x128xf32>
    %42 = arith.addf %41, %33 : vector<1x128xf32>
    %c0_14 = arith.constant 0 : index
    %c0_15 = arith.constant 0 : index
    %c0_16 = arith.constant 0 : index
    %43 = vector.load %arg6[%c0_14, %c0_15, %c0_16] : memref<1x1x128xf32, #tpu.memory_space<vmem>>, vector<1x1x128xf32>
    %44 = vector.shape_cast %43 : vector<1x1x128xf32> to vector<1x128xf32>
    %45 = vector.shape_cast %42 : vector<1x128xf32> to vector<1x1x128xf32>
    tpu.vector_store %arg6[%c0_14, %c0_15, %c0_16], %45 {strides = array<i32>} : memref<1x1x128xf32, #tpu.memory_space<vmem>>, vector<1x1x128xf32>,
    return
  }
  func.func @transform_0(%arg0: i32) -> (i32, i32, i32) {
    %c0_i32 = arith.constant 0 : i32
    %c0_i32_0 = arith.constant 0 : i32
    %c0_i32_1 = arith.constant 0 : i32
    return %arg0, %c0_i32, %c0_i32_0 : i32, i32, i32
  }
  func.func @transform_1(%arg0: i32) -> (i32, i32) {
    %c0_i32 = arith.constant 0 : i32
    %c0_i32_0 = arith.constant 0 : i32
    %c0_i32_1 = arith.constant 0 : i32
    return %c0_i32, %c0_i32_0 : i32, i32
  }
  func.func @transform_2(%arg0: i32) -> (i32, i32) {
    %c0_i32 = arith.constant 0 : i32
    %c0_i32_0 = arith.constant 0 : i32
    %c0_i32_1 = arith.constant 0 : i32
    return %c0_i32, %c0_i32_0 : i32, i32
  }
  func.func @transform_3(%arg0: i32) -> (i32, i32) {
    %c0_i32 = arith.constant 0 : i32
    %c0_i32_0 = arith.constant 0 : i32
    %c0_i32_1 = arith.constant 0 : i32
    return %c0_i32, %c0_i32_0 : i32, i32
  }
  func.func @transform_4(%arg0: i32) -> (i32, i32) {
    %c0_i32 = arith.constant 0 : i32
    %c0_i32_0 = arith.constant 0 : i32
    %c0_i32_1 = arith.constant 0 : i32
    return %c0_i32, %c0_i32_0 : i32, i32
  }
  func.func @transform_5(%arg0: i32) -> (i32, i32, i32) {
    %c0_i32 = arith.constant 0 : i32
    %c0_i32_0 = arith.constant 0 : i32
    %c0_i32_1 = arith.constant 0 : i32
    return %arg0, %c0_i32, %c0_i32_0 : i32, i32, i32
  }
}

</mosaic_0001>

<llo_original>
// kernel: mcnn_forward.1
$region0: #{mcnn_forward.1}
  #allocation0 [shape = 'u32[]', space=smem, size = 0x4, offset = 0x4, fixed_abs, tag = 'smem constant byte address 0x4 - core index']
  #allocation1 [shape = 'u32[144,128]{1,0:T(1,128)}', space=vmem, size = 0x12000, scoped, tag = 'internal scratch']
  %s0 = inlined_call_operand.vmem [shape: bf16[2,32,3072], index: 0, kind: input, shape index: {}]
  %s1 = inlined_call_operand.vmem [shape: bf16[32,32], index: 1, kind: input, shape index: {}]
  %s2 = inlined_call_operand.vmem [shape: f32[32,1], index: 2, kind: input, shape index: {}]
  %s3 = inlined_call_operand.vmem [shape: f32[32,128], index: 3, kind: input, shape index: {}]
  %s4 = inlined_call_operand.vmem [shape: f32[1,128], index: 4, kind: input, shape index: {}]
  %s5 = inlined_call_operand.hbm [shape: f32[2,1,128], index: 5, kind: output, shape index: {}]
  %s6 = sld [smem:[#allocation0]]
  $region53: #{mcnn_forward.1} parent=0
    _
  %s8 = ssub.s32 1, %s6
  %s9 = scalar_select 0, %s8, %s6
  $region1: #{mcnn_forward.1} parent=0
    #allocation2 [shape = 'u8[1024]{0}', space=vmem, size = 0x400, scoped, tag = 'output window, operand 0']
    #allocation3 [shape = 's32[2]{0}', space=sflag, size = 0x8, scoped, tag = 'scoped memory for mcnn_forward.1']
    %10 = vsyncpa [#allocation3], 0
    %s11 = scalar_lea.sflag [#allocation3], 1
    %12 = vsyncpa %s11, 0
    loop: start=0, step=1, limit=4
    $region2: #{mcnn_forward.1} parent=1 // loop_pre_header
      _
    $region3: #{mcnn_forward.1} parent=1 // loop_header
      %s14 = sphi 0, %s18
      %p15 = scmp.ge.s32.totalorder %s14, 4
      %s24 = sphi 0, %s26
      %s27 = sphi 0, %s24
      %s28 = sphi 0, %s27
      %s44 = sphi 0, %s28
      %s48 = sphi 0, %s48
      %s50 = sphi 0, %s48
      %s51 = sphi 0, %s50
      %s65 = sphi 0, %s51
      %s69 = sphi 0, %s69
      %s71 = sphi 0, %s69
      %s72 = sphi 0, %s71
      %s86 = sphi 0, %s72
      %s90 = sphi 0, %s90
      %s92 = sphi 0, %s90
      %s93 = sphi 0, %s92
      %s107 = sphi 0, %s93
      %s111 = sphi 0, %s111
      %s113 = sphi 0, %s111
      %s114 = sphi 0, %s113
      %s128 = sphi 0, %s114
      %s134 = sphi 0, %s136
      %s137 = sphi 0, %s134
      %s138 = sphi 0, %s137
      %s154 = sphi 0, %s138
    $region4: #{mcnn_forward.1} parent=1 // loop_header_branch
      %17 = sbr.rel (%p15) target = $region8
    $region5: #{mcnn_forward.1} parent=1 // loop_body
      %s19 = ssub.s32 %s14, 1
      %s20 = ssub.s32 %s14, 2
      %s21 = sadd.s32 %s14, 1
      %s22 = ssub.s32 %s14, %s21
      %p23 = scmp.eq.s32.totalorder %s22, 0
      %s25 = sadd.s32 %s24, 1
      %s26 = scalar_select %p23, %s24, %s25
      %p29 = pneg %p23
      %p30 = scmp.eq.s32.totalorder %s14, 1
      %p31 = por %p29, %p30
      %p32 = scmp.ne.s32.totalorder %s24, %s27
      %p33 = scmp.eq.s32.totalorder %s14, 0
      %p34 = por %p32, %p33
      %p35 = scmp.ne.s32.totalorder %s24, %s27
      %p36 = scmp.eq.s32.totalorder %s19, 1
      %p37 = por %p35, %p36
      %p38 = scmp.ne.s32.totalorder %s27, %s28
      %p39 = scmp.eq.s32.totalorder %s19, 0
      %p40 = por %p38, %p39
      %p41 = scmp.ne.s32.totalorder %s27, %s28
      %p42 = scmp.eq.s32.totalorder %s20, 1
      %p43 = por %p41, %p42
      %p45 = scmp.ne.s32.totalorder %s28, %s44
      %p46 = scmp.eq.s32.totalorder %s20, 0
      %p47 = por %p45, %p46
      %s49 = sadd.s32 %s48, 1
      %p52 = scmp.eq.s32.totalorder %s14, 1
      %p53 = scmp.ne.s32.totalorder %s48, %s50
      %p54 = scmp.eq.s32.totalorder %s14, 0
      %p55 = por %p53, %p54
      %p56 = scmp.ne.s32.totalorder %s48, %s50
      %p57 = scmp.eq.s32.totalorder %s19, 1
      %p58 = por %p56, %p57
      %p59 = scmp.ne.s32.totalorder %s50, %s51
      %p60 = scmp.eq.s32.totalorder %s19, 0
      %p61 = por %p59, %p60
      %p62 = scmp.ne.s32.totalorder %s50, %s51
      %p63 = scmp.eq.s32.totalorder %s20, 1
      %p64 = por %p62, %p63
      %p66 = scmp.ne.s32.totalorder %s51, %s65
      %p67 = scmp.eq.s32.totalorder %s20, 0
      %p68 = por %p66, %p67
      %s70 = sadd.s32 %s69, 1
      %p73 = scmp.eq.s32.totalorder %s14, 1
      %p74 = scmp.ne.s32.totalorder %s69, %s71
      %p75 = scmp.eq.s32.totalorder %s14, 0
      %p76 = por %p74, %p75
      %p77 = scmp.ne.s32.totalorder %s69, %s71
      %p78 = scmp.eq.s32.totalorder %s19, 1
      %p79 = por %p77, %p78
      %p80 = scmp.ne.s32.totalorder %s71, %s72
      %p81 = scmp.eq.s32.totalorder %s19, 0
      %p82 = por %p80, %p81
      %p83 = scmp.ne.s32.totalorder %s71, %s72
      %p84 = scmp.eq.s32.totalorder %s20, 1
      %p85 = por %p83, %p84
      %p87 = scmp.ne.s32.totalorder %s72, %s86
      %p88 = scmp.eq.s32.totalorder %s20, 0
      %p89 = por %p87, %p88
      %s91 = sadd.s32 %s90, 1
      %p94 = scmp.eq.s32.totalorder %s14, 1
      %p95 = scmp.ne.s32.totalorder %s90, %s92
      %p96 = scmp.eq.s32.totalorder %s14, 0
      %p97 = por %p95, %p96
      %p98 = scmp.ne.s32.totalorder %s90, %s92
      %p99 = scmp.eq.s32.totalorder %s19, 1
      %p100 = por %p98, %p99
      %p101 = scmp.ne.s32.totalorder %s92, %s93
      %p102 = scmp.eq.s32.totalorder %s19, 0
      %p103 = por %p101, %p102
      %p104 = scmp.ne.s32.totalorder %s92, %s93
      %p105 = scmp.eq.s32.totalorder %s20, 1
      %p106 = por %p104, %p105
      %p108 = scmp.ne.s32.totalorder %s93, %s107
      %p109 = scmp.eq.s32.totalorder %s20, 0
      %p110 = por %p108, %p109
      %s112 = sadd.s32 %s111, 1
      %p115 = scmp.eq.s32.totalorder %s14, 1
      %p116 = scmp.ne.s32.totalorder %s111, %s113
      %p117 = scmp.eq.s32.totalorder %s14, 0
      %p118 = por %p116, %p117
      %p119 = scmp.ne.s32.totalorder %s111, %s113
      %p120 = scmp.eq.s32.totalorder %s19, 1
      %p121 = por %p119, %p120
      %p122 = scmp.ne.s32.totalorder %s113, %s114
      %p123 = scmp.eq.s32.totalorder %s19, 0
      %p124 = por %p122, %p123
      %p125 = scmp.ne.s32.totalorder %s113, %s114
      %p126 = scmp.eq.s32.totalorder %s20, 1
      %p127 = por %p125, %p126
      %p129 = scmp.ne.s32.totalorder %s114, %s128
      %p130 = scmp.eq.s32.totalorder %s20, 0
      %p131 = por %p129, %p130
      %s132 = ssub.s32 %s14, %s21
      %p133 = scmp.eq.s32.totalorder %s132, 0
      %s135 = sadd.s32 %s134, 1
      %s136 = scalar_select %p133, %s134, %s135
      %p139 = pneg %p133
      %p140 = scmp.eq.s32.totalorder %s14, 1
      %p141 = por %p139, %p140
      %p142 = scmp.ne.s32.totalorder %s134, %s137
      %p143 = scmp.eq.s32.totalorder %s14, 0
      %p144 = por %p142, %p143
      %p145 = scmp.ne.s32.totalorder %s134, %s137
      %p146 = scmp.eq.s32.totalorder %s19, 1
      %p147 = por %p145, %p146
      %p148 = scmp.ne.s32.totalorder %s137, %s138
      %p149 = scmp.eq.s32.totalorder %s19, 0
      %p150 = por %p148, %p149
      %p151 = scmp.ne.s32.totalorder %s137, %s138
      %p152 = scmp.eq.s32.totalorder %s20, 1
      %p153 = por %p151, %p152
      %p155 = scmp.ne.s32.totalorder %s138, %s154
      %p156 = scmp.eq.s32.totalorder %s20, 0
      %p157 = por %p155, %p156
      %p158 = scmp.le.s32.totalorder 1, %s14
      %p159 = scmp.lt.s32.totalorder %s14, 3
      %p160 = pnand %p158, %p159
      %p161 = pneg %p160
      // Predicated region
      $region9: #{mcnn_forward.1} parent=5 // pred_check
        _
      $region10: #{mcnn_forward.1} parent=5 // pred_check_branch
        %163 = sbr.rel (%p160) target = $region12
      $region11: #{mcnn_forward.1} parent=5 // pred_region
        %s164 = ssub.s32 %s14, 1
        // Predicated region
        $region13: #{mcnn_forward.1} parent=11 // pred_check
          %p165 = pneg %p61
        $region14: #{mcnn_forward.1} parent=11 // pred_check_branch
          %167 = sbr.rel (%p165) target = $region16
        $region15: #{mcnn_forward.1} parent=11 // pred_region
          _
        $region16: #{mcnn_forward.1} parent=11 // pred_fallthru
          _
        // Predicated region
        $region17: #{mcnn_forward.1} parent=11 // pred_check
          %p168 = pneg %p82
        $region18: #{mcnn_forward.1} parent=11 // pred_check_branch
          %170 = sbr.rel (%p168) target = $region20
        $region19: #{mcnn_forward.1} parent=11 // pred_region
          _
        $region20: #{mcnn_forward.1} parent=11 // pred_fallthru
          _
        // Predicated region
        $region21: #{mcnn_forward.1} parent=11 // pred_check
          %p171 = pneg %p103
        $region22: #{mcnn_forward.1} parent=11 // pred_check_branch
          %173 = sbr.rel (%p171) target = $region24
        $region23: #{mcnn_forward.1} parent=11 // pred_region
          _
        $region24: #{mcnn_forward.1} parent=11 // pred_fallthru
          _
        // Predicated region
        $region25: #{mcnn_forward.1} parent=11 // pred_check
          %p174 = pneg %p124
        $region26: #{mcnn_forward.1} parent=11 // pred_check_branch
          %176 = sbr.rel (%p174) target = $region28
        $region27: #{mcnn_forward.1} parent=11 // pred_region
          _
        $region28: #{mcnn_forward.1} parent=11 // pred_fallthru
          _
      $region12: #{mcnn_forward.1} parent=5 // pred_fallthru
        _
      %p177 = scmp.lt.s32.totalorder %s14, 2
      // Predicated region
      $region29: #{mcnn_forward.1} parent=5 // pred_check
        %p178 = pneg %p177
      $region30: #{mcnn_forward.1} parent=5 // pred_check_branch
        %180 = sbr.rel (%p178) target = $region32
      $region31: #{mcnn_forward.1} parent=5 // pred_region
        // Predicated region
        $region33: #{mcnn_forward.1} parent=31 // pred_check
          %p181 = pneg %p34
        $region34: #{mcnn_forward.1} parent=31 // pred_check_branch
          %183 = sbr.rel (%p181) target = $region36
        $region35: #{mcnn_forward.1} parent=31 // pred_region
          %p184 = scmp.lt.s32.totalorder %s14, 1
          %s185 = scalar_select %p184, %s14, 1
          %s186 = smul.addr %s185, 96
          %s187 = smul.addr %s186, 4
          %s188 = scalar_lea.vmem %s0, %s187
        $region36: #{mcnn_forward.1} parent=31 // pred_fallthru
          _
      $region32: #{mcnn_forward.1} parent=5 // pred_fallthru
        _
      %p189 = scmp.le.s32.totalorder 1, %s14
      %p190 = scmp.lt.s32.totalorder %s14, 3
      %p191 = pnand %p189, %p190
      %p192 = pneg %p191
      // Predicated region
      $region37: #{mcnn_forward.1} parent=5 // pred_check
        _
      $region38: #{mcnn_forward.1} parent=5 // pred_check_branch
        %194 = sbr.rel (%p191) target = $region40
      $region39: #{mcnn_forward.1} parent=5 // pred_region
        %s195 = ssub.s32 %s14, 1
        %p196 = scmp.lt.s32.totalorder %s19, 1
        %s197 = scalar_select %p196, %s19, 1
        %s198 = smul.addr %s197, 96
        %s199 = smul.addr %s198, 4
        %s200 = scalar_lea.vmem %s0, %s199
        %p201 = pneg %p40
        %p202 = pneg %p37
        %p203 = pneg %p61
        %p204 = pneg %p58
        %p205 = pneg %p82
        %p206 = pneg %p79
        %p207 = pneg %p103
        %p208 = pneg %p100
        %p209 = pneg %p124
        %p210 = pneg %p121
        %p211 = pneg %p150
        %p212 = pneg %p147
        %s213 = sand.u32 %s137, 1
        %s214 = scalar_lea.sflag [#allocation3], %s213
        %s215 = sand.u32 %s137, 1
        %s216 = scalar_lea.vmem [#allocation2], %s215
        %p217 = scmp.lt.s32.totalorder %s19, 1
        %s218 = scalar_select %p217, %s19, 1
        %s219 = smul.addr %s218, 96
        %s220 = smul.addr %s219, 4
        %s221 = scalar_lea.vmem %s0, %s220
        %v223 = vld [vmem:[%s221] sm:$0xff]
        %v224 = vld [vmem:[%s221 + $0x8] sm:$0xff]
        %v225 = vld [vmem:[%s221 + $0x10] sm:$0xff]
        %v226 = vld [vmem:[%s221 + $0x18] sm:$0xff]
        %v227 = vld [vmem:[%s221 + $0x20] sm:$0xff]
        %v228 = vld [vmem:[%s221 + $0x28] sm:$0xff]
        %v229 = vld [vmem:[%s221 + $0x30] sm:$0xff]
        %v230 = vld [vmem:[%s221 + $0x38] sm:$0xff]
        %v231 = vld [vmem:[%s221 + $0x40] sm:$0xff]
        %v232 = vld [vmem:[%s221 + $0x48] sm:$0xff]
        %v233 = vld [vmem:[%s221 + $0x50] sm:$0xff]
        %v234 = vld [vmem:[%s221 + $0x58] sm:$0xff]
        %v235 = vld [vmem:[%s221 + $0x60] sm:$0xff]
        %v236 = vld [vmem:[%s221 + $0x68] sm:$0xff]
        %v237 = vld [vmem:[%s221 + $0x70] sm:$0xff]
        %v238 = vld [vmem:[%s221 + $0x78] sm:$0xff]
        %v239 = vld [vmem:[%s221 + $0x80] sm:$0xff]
        %v240 = vld [vmem:[%s221 + $0x88] sm:$0xff]
        %v241 = vld [vmem:[%s221 + $0x90] sm:$0xff]
        %v242 = vld [vmem:[%s221 + $0x98] sm:$0xff]
        %v243 = vld [vmem:[%s221 + $0xa0] sm:$0xff]
        %v244 = vld [vmem:[%s221 + $0xa8] sm:$0xff]
        %v245 = vld [vmem:[%s221 + $0xb0] sm:$0xff]
        %v246 = vld [vmem:[%s221 + $0xb8] sm:$0xff]
        %v247 = vld [vmem:[%s221 + $0xc0] sm:$0xff]
        %v248 = vld [vmem:[%s221 + $0xc8] sm:$0xff]
        %v249 = vld [vmem:[%s221 + $0xd0] sm:$0xff]
        %v250 = vld [vmem:[%s221 + $0xd8] sm:$0xff]
        %v251 = vld [vmem:[%s221 + $0xe0] sm:$0xff]
        %v252 = vld [vmem:[%s221 + $0xe8] sm:$0xff]
        %v253 = vld [vmem:[%s221 + $0xf0] sm:$0xff]
        %v254 = vld [vmem:[%s221 + $0xf8] sm:$0xff]
        %v255 = vld [vmem:[%s221 + $0x100] sm:$0xff]
        %v256 = vld [vmem:[%s221 + $0x108] sm:$0xff]
        %v257 = vld [vmem:[%s221 + $0x110] sm:$0xff]
        %v258 = vld [vmem:[%s221 + $0x118] sm:$0xff]
        %v259 = vld [vmem:[%s221 + $0x120] sm:$0xff]
        %v260 = vld [vmem:[%s221 + $0x128] sm:$0xff]
        %v261 = vld [vmem:[%s221 + $0x130] sm:$0xff]
        %v262 = vld [vmem:[%s221 + $0x138] sm:$0xff]
        %v263 = vld [vmem:[%s221 + $0x140] sm:$0xff]
        %v264 = vld [vmem:[%s221 + $0x148] sm:$0xff]
        %v265 = vld [vmem:[%s221 + $0x150] sm:$0xff]
        %v266 = vld [vmem:[%s221 + $0x158] sm:$0xff]
        %v267 = vld [vmem:[%s221 + $0x160] sm:$0xff]
        %v268 = vld [vmem:[%s221 + $0x168] sm:$0xff]
        %v269 = vld [vmem:[%s221 + $0x170] sm:$0xff]
        %v270 = vld [vmem:[%s221 + $0x178] sm:$0xff]
        %v271 = vld [vmem:[%s1] sm:$0xf]
        %v272 = vld [vmem:[%s1 + $0x4] sm:$0xf]
        %v273 = vld [vmem:[%s1 + $0x8] sm:$0xf]
        %v274 = vld [vmem:[%s1 + $0xc] sm:$0xf]
        %v275 = vld [vmem:[%s2] sm:$0xff]
        %v276 = vld [vmem:[%s2 + $0x8] sm:$0xff]
        %v277 = vld [vmem:[%s2 + $0x10] sm:$0xff]
        %v278 = vld [vmem:[%s2 + $0x18] sm:$0xff]
        %280 = vset.pattern.permute.xlu0 0
        %281 = vperm.xlu0 %280, %v275
        %v282 = vpop.permute.xlu0 %281
        %285 = vset.pattern.permute.xlu0 0
        %286 = vperm.xlu0 %285, %v276
        %v287 = vpop.permute.xlu0 %286
        %290 = vset.pattern.permute.xlu0 0
        %291 = vperm.xlu0 %290, %v277
        %v292 = vpop.permute.xlu0 %291
        %295 = vset.pattern.permute.xlu0 0
        %296 = vperm.xlu0 %295, %v278
        %v297 = vpop.permute.xlu0 %296
        %v303 = vunpack.c.l.b16 %v271
        %v304 = vunpack.c.l.b16 %v272
        %v305 = vunpack.c.l.b16 %v273
        %v306 = vunpack.c.l.b16 %v274
        %v307 = vpack.c.b16 %v304, %v303
        %v308 = vpack.c.b16 %v306, %v305
        %v357 = vunpack.c.l.b16 %v223
        %v358 = vunpack.c.h.b16 %v223
        %v359 = vunpack.c.l.b16 %v224
        %v360 = vunpack.c.h.b16 %v224
        %v361 = vunpack.c.l.b16 %v225
        %v362 = vunpack.c.h.b16 %v225
        %v363 = vunpack.c.l.b16 %v226
        %v364 = vunpack.c.h.b16 %v226
        %v365 = vunpack.c.l.b16 %v227
        %v366 = vunpack.c.h.b16 %v227
        %v367 = vunpack.c.l.b16 %v228
        %v368 = vunpack.c.h.b16 %v228
        %v369 = vunpack.c.l.b16 %v229
        %v370 = vunpack.c.h.b16 %v229
        %v371 = vunpack.c.l.b16 %v230
        %v372 = vunpack.c.h.b16 %v230
        %v373 = vunpack.c.l.b16 %v231
        %v374 = vunpack.c.h.b16 %v231
        %v375 = vunpack.c.l.b16 %v232
        %v376 = vunpack.c.h.b16 %v232
        %v377 = vunpack.c.l.b16 %v233
        %v378 = vunpack.c.h.b16 %v233
        %v379 = vunpack.c.l.b16 %v234
        %v380 = vunpack.c.h.b16 %v234
        %v381 = vunpack.c.l.b16 %v235
        %v382 = vunpack.c.h.b16 %v235
        %v383 = vunpack.c.l.b16 %v236
        %v384 = vunpack.c.h.b16 %v236
        %v385 = vunpack.c.l.b16 %v237
        %v386 = vunpack.c.h.b16 %v237
        %v387 = vunpack.c.l.b16 %v238
        %v388 = vunpack.c.h.b16 %v238
        %v389 = vunpack.c.l.b16 %v239
        %v390 = vunpack.c.h.b16 %v239
        %v391 = vunpack.c.l.b16 %v240
        %v392 = vunpack.c.h.b16 %v240
        %v393 = vunpack.c.l.b16 %v241
        %v394 = vunpack.c.h.b16 %v241
        %v395 = vunpack.c.l.b16 %v242
        %v396 = vunpack.c.h.b16 %v242
        %v397 = vunpack.c.l.b16 %v243
        %v398 = vunpack.c.h.b16 %v243
        %v399 = vunpack.c.l.b16 %v244
        %v400 = vunpack.c.h.b16 %v244
        %v401 = vunpack.c.l.b16 %v245
        %v402 = vunpack.c.h.b16 %v245
        %v403 = vunpack.c.l.b16 %v246
        %v404 = vunpack.c.h.b16 %v246
        %v405 = vunpack.c.l.b16 %v247
        %v406 = vunpack.c.h.b16 %v247
        %v407 = vunpack.c.l.b16 %v248
        %v408 = vunpack.c.h.b16 %v248
        %v409 = vunpack.c.l.b16 %v249
        %v410 = vunpack.c.h.b16 %v249
        %v411 = vunpack.c.l.b16 %v250
        %v412 = vunpack.c.h.b16 %v250
        %v413 = vunpack.c.l.b16 %v251
        %v414 = vunpack.c.h.b16 %v251
        %v415 = vunpack.c.l.b16 %v252
        %v416 = vunpack.c.h.b16 %v252
        %v417 = vunpack.c.l.b16 %v253
        %v418 = vunpack.c.h.b16 %v253
        %v419 = vunpack.c.l.b16 %v254
        %v420 = vunpack.c.h.b16 %v254
        %v421 = vunpack.c.l.b16 %v255
        %v422 = vunpack.c.h.b16 %v255
        %v423 = vunpack.c.l.b16 %v256
        %v424 = vunpack.c.h.b16 %v256
        %v425 = vunpack.c.l.b16 %v257
        %v426 = vunpack.c.h.b16 %v257
        %v427 = vunpack.c.l.b16 %v258
        %v428 = vunpack.c.h.b16 %v258
        %v429 = vunpack.c.l.b16 %v259
        %v430 = vunpack.c.h.b16 %v259
        %v431 = vunpack.c.l.b16 %v260
        %v432 = vunpack.c.h.b16 %v260
        %v433 = vunpack.c.l.b16 %v261
        %v434 = vunpack.c.h.b16 %v261
        %v435 = vunpack.c.l.b16 %v262
        %v436 = vunpack.c.h.b16 %v262
        %v437 = vunpack.c.l.b16 %v263
        %v438 = vunpack.c.h.b16 %v263
        %v439 = vunpack.c.l.b16 %v264
        %v440 = vunpack.c.h.b16 %v264
        %v441 = vunpack.c.l.b16 %v265
        %v442 = vunpack.c.h.b16 %v265
        %v443 = vunpack.c.l.b16 %v266
        %v444 = vunpack.c.h.b16 %v266
        %v445 = vunpack.c.l.b16 %v267
        %v446 = vunpack.c.h.b16 %v267
        %v447 = vunpack.c.l.b16 %v268
        %v448 = vunpack.c.h.b16 %v268
        %v449 = vunpack.c.l.b16 %v269
        %v450 = vunpack.c.h.b16 %v269
        %v451 = vunpack.c.l.b16 %v270
        %v452 = vunpack.c.h.b16 %v270
        %v453 = vpack.c.b16 %v381, %v357
        %v454 = vpack.c.b16 %v382, %v358
        %v455 = vpack.c.b16 %v383, %v359
        %v456 = vpack.c.b16 %v384, %v360
        %v457 = vpack.c.b16 %v385, %v361
        %v458 = vpack.c.b16 %v386, %v362
        %v459 = vpack.c.b16 %v387, %v363
        %v460 = vpack.c.b16 %v388, %v364
        %v461 = vpack.c.b16 %v389, %v365
        %v462 = vpack.c.b16 %v390, %v366
        %v463 = vpack.c.b16 %v391, %v367
        %v464 = vpack.c.b16 %v392, %v368
        %v465 = vpack.c.b16 %v393, %v369
        %v466 = vpack.c.b16 %v394, %v370
        %v467 = vpack.c.b16 %v395, %v371
        %v468 = vpack.c.b16 %v396, %v372
        %v469 = vpack.c.b16 %v397, %v373
        %v470 = vpack.c.b16 %v398, %v374
        %v471 = vpack.c.b16 %v399, %v375
        %v472 = vpack.c.b16 %v400, %v376
        %v473 = vpack.c.b16 %v401, %v377
        %v474 = vpack.c.b16 %v402, %v378
        %v475 = vpack.c.b16 %v403, %v379
        %v476 = vpack.c.b16 %v404, %v380
        %v477 = vpack.c.b16 %v429, %v405
        %v478 = vpack.c.b16 %v430, %v406
        %v479 = vpack.c.b16 %v431, %v407
        %v480 = vpack.c.b16 %v432, %v408
        %v481 = vpack.c.b16 %v433, %v409
        %v482 = vpack.c.b16 %v434, %v410
        %v483 = vpack.c.b16 %v435, %v411
        %v484 = vpack.c.b16 %v436, %v412
        %v485 = vpack.c.b16 %v437, %v413
        %v486 = vpack.c.b16 %v438, %v414
        %v487 = vpack.c.b16 %v439, %v415
        %v488 = vpack.c.b16 %v440, %v416
        %v489 = vpack.c.b16 %v441, %v417
        %v490 = vpack.c.b16 %v442, %v418
        %v491 = vpack.c.b16 %v443, %v419
        %v492 = vpack.c.b16 %v444, %v420
        %v493 = vpack.c.b16 %v445, %v421
        %v494 = vpack.c.b16 %v446, %v422
        %v495 = vpack.c.b16 %v447, %v423
        %v496 = vpack.c.b16 %v448, %v424
        %v497 = vpack.c.b16 %v449, %v425
        %v498 = vpack.c.b16 %v450, %v426
        %v499 = vpack.c.b16 %v451, %v427
        %v500 = vpack.c.b16 %v452, %v428
        %vm549 = vcmask 261120
        %v551 = vsel %vm549, %v307, 0
        %v554 = vsel %vm549, %v308, 0
        %556 = vmatprep.subr.bf16.mxu0 0
        %557 = vmatpush1.bf16.msra.mxu0 0
        %558 = vmatprep.subr.bf16.mxu0 0
        %559 = vmatpush1.bf16.msra.mxu0 0
        %560 = vmatprep.subr.bf16.mxu0 0
        %561 = vmatpush1.bf16.msra.mxu0 0
        %562 = vmatprep.subr.bf16.mxu0 0
        %563 = vmatpush1.bf16.msra.mxu0 0
        %564 = vmatprep.subr.bf16.mxu0 0
        %565 = vmatpush1.bf16.msra.mxu0 0
        %566 = vmatprep.subr.bf16.mxu0 0
        %567 = vmatpush1.bf16.msra.mxu0 0
        %568 = vmatprep.subr.bf16.mxu0 %v478
        %569 = vmatpush1.bf16.msra.mxu0 %v477
        %570 = vmatprep.subr.bf16.mxu0 %v454
        %571 = vmatpush1.bf16.msra.mxu0 %v453
        %572 = vmatprep.subr.bf16.mxu0 0
        %573 = vmatpush2.bf16.msra.mxu0 0
        %574 = vmatprep.subr.bf16.mxu0 0
        %575 = vmatpush2.bf16.msra.mxu0 0
        %576 = vmatprep.subr.bf16.mxu0 0
        %577 = vmatpush2.bf16.msra.mxu0 0
        %578 = vmatprep.subr.bf16.mxu0 0
        %579 = vmatpush2.bf16.msra.mxu0 0
        %580 = vmatprep.subr.bf16.mxu0 0
        %581 = vmatpush2.bf16.msra.mxu0 0
        %582 = vmatprep.subr.bf16.mxu0 0
        %583 = vmatpush2.bf16.msra.mxu0 0
        %584 = vmatprep.subr.bf16.mxu0 0
        %585 = vmatpush2.bf16.msra.mxu0 0
        %586 = vmatprep.subr.bf16.mxu0 0
        %587 = vmatpush2.bf16.msra.mxu0 0
        %588 = vmatprep.mubr.bf16.mxu0 0
        %589 = vmatmul.mubr.bf16.gmra.mxu0 %v551
        %v590 = vpop.f32.mrf.mxu0
        %v591 = vadd.f32 %v282, %v590
        %v592 = vpop.f32.mrf.mxu0
        %v593 = vadd.f32 %v282, %v592
        %v594 = vpop.f32.mrf.mxu0
        %v595 = vadd.f32 %v287, %v594
        %v596 = vpop.f32.mrf.mxu0
        %v597 = vadd.f32 %v287, %v596
        %598 = vmatprep.mubr.bf16.mxu0 0
        %599 = vmatmul.mubr.bf16.gmra.mxu0 %v554
        %v600 = vpop.f32.mrf.mxu0
        %v601 = vadd.f32 %v292, %v600
        %v602 = vpop.f32.mrf.mxu0
        %v603 = vadd.f32 %v292, %v602
        %v604 = vpop.f32.mrf.mxu0
        %v605 = vadd.f32 %v297, %v604
        %v606 = vpop.f32.mrf.mxu0
        %v607 = vadd.f32 %v297, %v606
        %608 = vdwg.mxu0
        %609 = vmatprep.subr.bf16.mxu0 0
        %610 = vmatpush1.bf16.msra.mxu0 0
        %611 = vmatprep.subr.bf16.mxu0 0
        %612 = vmatpush1.bf16.msra.mxu0 0
        %613 = vmatprep.subr.bf16.mxu0 0
        %614 = vmatpush1.bf16.msra.mxu0 0
        %615 = vmatprep.subr.bf16.mxu0 0
        %616 = vmatpush1.bf16.msra.mxu0 0
        %617 = vmatprep.subr.bf16.mxu0 0
        %618 = vmatpush1.bf16.msra.mxu0 0
        %619 = vmatprep.subr.bf16.mxu0 0
        %620 = vmatpush1.bf16.msra.mxu0 0
        %621 = vmatprep.subr.bf16.mxu0 %v480
        %622 = vmatpush1.bf16.msra.mxu0 %v479
        %623 = vmatprep.subr.bf16.mxu0 %v456
        %624 = vmatpush1.bf16.msra.mxu0 %v455
        %625 = vmatprep.subr.bf16.mxu0 0
        %626 = vmatpush2.bf16.msra.mxu0 0
        %627 = vmatprep.subr.bf16.mxu0 0
        %628 = vmatpush2.bf16.msra.mxu0 0
        %629 = vmatprep.subr.bf16.mxu0 0
        %630 = vmatpush2.bf16.msra.mxu0 0
        %631 = vmatprep.subr.bf16.mxu0 0
        %632 = vmatpush2.bf16.msra.mxu0 0
        %633 = vmatprep.subr.bf16.mxu0 0
        %634 = vmatpush2.bf16.msra.mxu0 0
        %635 = vmatprep.subr.bf16.mxu0 0
        %636 = vmatpush2.bf16.msra.mxu0 0
        %637 = vmatprep.subr.bf16.mxu0 0
        %638 = vmatpush2.bf16.msra.mxu0 0
        %639 = vmatprep.subr.bf16.mxu0 0
        %640 = vmatpush2.bf16.msra.mxu0 0
        %641 = vmatprep.mubr.bf16.mxu0 0
        %642 = vmatmul.mubr.bf16.gmra.mxu0 %v551
        %v643 = vpop.f32.mrf.mxu0
        %v644 = vadd.f32 %v282, %v643
        %v645 = vpop.f32.mrf.mxu0
        %v646 = vadd.f32 %v282, %v645
        %v647 = vpop.f32.mrf.mxu0
        %v648 = vadd.f32 %v287, %v647
        %v649 = vpop.f32.mrf.mxu0
        %v650 = vadd.f32 %v287, %v649
        %651 = vmatprep.mubr.bf16.mxu0 0
        %652 = vmatmul.mubr.bf16.gmra.mxu0 %v554
        %v653 = vpop.f32.mrf.mxu0
        %v654 = vadd.f32 %v292, %v653
        %v655 = vpop.f32.mrf.mxu0
        %v656 = vadd.f32 %v292, %v655
        %v657 = vpop.f32.mrf.mxu0
        %v658 = vadd.f32 %v297, %v657
        %v659 = vpop.f32.mrf.mxu0
        %v660 = vadd.f32 %v297, %v659
        %661 = vdwg.mxu0
        %662 = vmatprep.subr.bf16.mxu0 0
        %663 = vmatpush1.bf16.msra.mxu0 0
        %664 = vmatprep.subr.bf16.mxu0 0
        %665 = vmatpush1.bf16.msra.mxu0 0
        %666 = vmatprep.subr.bf16.mxu0 0
        %667 = vmatpush1.bf16.msra.mxu0 0
        %668 = vmatprep.subr.bf16.mxu0 0
        %669 = vmatpush1.bf16.msra.mxu0 0
        %670 = vmatprep.subr.bf16.mxu0 0
        %671 = vmatpush1.bf16.msra.mxu0 0
        %672 = vmatprep.subr.bf16.mxu0 0
        %673 = vmatpush1.bf16.msra.mxu0 0
        %674 = vmatprep.subr.bf16.mxu0 %v482
        %675 = vmatpush1.bf16.msra.mxu0 %v481
        %676 = vmatprep.subr.bf16.mxu0 %v458
        %677 = vmatpush1.bf16.msra.mxu0 %v457
        %678 = vmatprep.subr.bf16.mxu0 0
        %679 = vmatpush2.bf16.msra.mxu0 0
        %680 = vmatprep.subr.bf16.mxu0 0
        %681 = vmatpush2.bf16.msra.mxu0 0
        %682 = vmatprep.subr.bf16.mxu0 0
        %683 = vmatpush2.bf16.msra.mxu0 0
        %684 = vmatprep.subr.bf16.mxu0 0
        %685 = vmatpush2.bf16.msra.mxu0 0
        %686 = vmatprep.subr.bf16.mxu0 0
        %687 = vmatpush2.bf16.msra.mxu0 0
        %688 = vmatprep.subr.bf16.mxu0 0
        %689 = vmatpush2.bf16.msra.mxu0 0
        %690 = vmatprep.subr.bf16.mxu0 0
        %691 = vmatpush2.bf16.msra.mxu0 0
        %692 = vmatprep.subr.bf16.mxu0 0
        %693 = vmatpush2.bf16.msra.mxu0 0
        %694 = vmatprep.mubr.bf16.mxu0 0
        %695 = vmatmul.mubr.bf16.gmra.mxu0 %v551
        %v696 = vpop.f32.mrf.mxu0
        %v697 = vadd.f32 %v282, %v696
        %v698 = vpop.f32.mrf.mxu0
        %v699 = vadd.f32 %v282, %v698
        %v700 = vpop.f32.mrf.mxu0
        %v701 = vadd.f32 %v287, %v700
        %v702 = vpop.f32.mrf.mxu0
        %v703 = vadd.f32 %v287, %v702
        %704 = vmatprep.mubr.bf16.mxu0 0
        %705 = vmatmul.mubr.bf16.gmra.mxu0 %v554
        %v706 = vpop.f32.mrf.mxu0
        %v707 = vadd.f32 %v292, %v706
        %v708 = vpop.f32.mrf.mxu0
        %v709 = vadd.f32 %v292, %v708
        %v710 = vpop.f32.mrf.mxu0
        %v711 = vadd.f32 %v297, %v710
        %v712 = vpop.f32.mrf.mxu0
        %v713 = vadd.f32 %v297, %v712
        %714 = vdwg.mxu0
        %715 = vmatprep.subr.bf16.mxu0 0
        %716 = vmatpush1.bf16.msra.mxu0 0
        %717 = vmatprep.subr.bf16.mxu0 0
        %718 = vmatpush1.bf16.msra.mxu0 0
        %719 = vmatprep.subr.bf16.mxu0 0
        %720 = vmatpush1.bf16.msra.mxu0 0
        %721 = vmatprep.subr.bf16.mxu0 0
        %722 = vmatpush1.bf16.msra.mxu0 0
        %723 = vmatprep.subr.bf16.mxu0 0
        %724 = vmatpush1.bf16.msra.mxu0 0
        %725 = vmatprep.subr.bf16.mxu0 0
        %726 = vmatpush1.bf16.msra.mxu0 0
        %727 = vmatprep.subr.bf16.mxu0 %v484
        %728 = vmatpush1.bf16.msra.mxu0 %v483
        %729 = vmatprep.subr.bf16.mxu0 %v460
        %730 = vmatpush1.bf16.msra.mxu0 %v459
        %731 = vmatprep.subr.bf16.mxu0 0
        %732 = vmatpush2.bf16.msra.mxu0 0
        %733 = vmatprep.subr.bf16.mxu0 0
        %734 = vmatpush2.bf16.msra.mxu0 0
        %735 = vmatprep.subr.bf16.mxu0 0
        %736 = vmatpush2.bf16.msra.mxu0 0
        %737 = vmatprep.subr.bf16.mxu0 0
        %738 = vmatpush2.bf16.msra.mxu0 0
        %739 = vmatprep.subr.bf16.mxu0 0
        %740 = vmatpush2.bf16.msra.mxu0 0
        %741 = vmatprep.subr.bf16.mxu0 0
        %742 = vmatpush2.bf16.msra.mxu0 0
        %743 = vmatprep.subr.bf16.mxu0 0
        %744 = vmatpush2.bf16.msra.mxu0 0
        %745 = vmatprep.subr.bf16.mxu0 0
        %746 = vmatpush2.bf16.msra.mxu0 0
        %747 = vmatprep.mubr.bf16.mxu0 0
        %748 = vmatmul.mubr.bf16.gmra.mxu0 %v551
        %v749 = vpop.f32.mrf.mxu0
        %v750 = vadd.f32 %v282, %v749
        %v751 = vpop.f32.mrf.mxu0
        %v752 = vadd.f32 %v282, %v751
        %v753 = vpop.f32.mrf.mxu0
        %v754 = vadd.f32 %v287, %v753
        %v755 = vpop.f32.mrf.mxu0
        %v756 = vadd.f32 %v287, %v755
        %757 = vmatprep.mubr.bf16.mxu0 0
        %758 = vmatmul.mubr.bf16.gmra.mxu0 %v554
        %v759 = vpop.f32.mrf.mxu0
        %v760 = vadd.f32 %v292, %v759
        %v761 = vpop.f32.mrf.mxu0
        %v762 = vadd.f32 %v292, %v761
        %v763 = vpop.f32.mrf.mxu0
        %v764 = vadd.f32 %v297, %v763
        %v765 = vpop.f32.mrf.mxu0
        %v766 = vadd.f32 %v297, %v765
        %767 = vdwg.mxu0
        %768 = vmatprep.subr.bf16.mxu0 0
        %769 = vmatpush1.bf16.msra.mxu0 0
        %770 = vmatprep.subr.bf16.mxu0 0
        %771 = vmatpush1.bf16.msra.mxu0 0
        %772 = vmatprep.subr.bf16.mxu0 0
        %773 = vmatpush1.bf16.msra.mxu0 0
        %774 = vmatprep.subr.bf16.mxu0 0
        %775 = vmatpush1.bf16.msra.mxu0 0
        %776 = vmatprep.subr.bf16.mxu0 0
        %777 = vmatpush1.bf16.msra.mxu0 0
        %778 = vmatprep.subr.bf16.mxu0 0
        %779 = vmatpush1.bf16.msra.mxu0 0
        %780 = vmatprep.subr.bf16.mxu0 %v486
        %781 = vmatpush1.bf16.msra.mxu0 %v485
        %782 = vmatprep.subr.bf16.mxu0 %v462
        %783 = vmatpush1.bf16.msra.mxu0 %v461
        %784 = vmatprep.subr.bf16.mxu0 0
        %785 = vmatpush2.bf16.msra.mxu0 0
        %786 = vmatprep.subr.bf16.mxu0 0
        %787 = vmatpush2.bf16.msra.mxu0 0
        %788 = vmatprep.subr.bf16.mxu0 0
        %789 = vmatpush2.bf16.msra.mxu0 0
        %790 = vmatprep.subr.bf16.mxu0 0
        %791 = vmatpush2.bf16.msra.mxu0 0
        %792 = vmatprep.subr.bf16.mxu0 0
        %793 = vmatpush2.bf16.msra.mxu0 0
        %794 = vmatprep.subr.bf16.mxu0 0
        %795 = vmatpush2.bf16.msra.mxu0 0
        %796 = vmatprep.subr.bf16.mxu0 0
        %797 = vmatpush2.bf16.msra.mxu0 0
        %798 = vmatprep.subr.bf16.mxu0 0
        %799 = vmatpush2.bf16.msra.mxu0 0
        %800 = vmatprep.mubr.bf16.mxu0 0
        %801 = vmatmul.mubr.bf16.gmra.mxu0 %v551
        %v802 = vpop.f32.mrf.mxu0
        %v803 = vadd.f32 %v282, %v802
        %v804 = vpop.f32.mrf.mxu0
        %v805 = vadd.f32 %v282, %v804
        %v806 = vpop.f32.mrf.mxu0
        %v807 = vadd.f32 %v287, %v806
        %v808 = vpop.f32.mrf.mxu0
        %v809 = vadd.f32 %v287, %v808
        %810 = vmatprep.mubr.bf16.mxu0 0
        %811 = vmatmul.mubr.bf16.gmra.mxu0 %v554
        %v812 = vpop.f32.mrf.mxu0
        %v813 = vadd.f32 %v292, %v812
        %v814 = vpop.f32.mrf.mxu0
        %v815 = vadd.f32 %v292, %v814
        %v816 = vpop.f32.mrf.mxu0
        %v817 = vadd.f32 %v297, %v816
        %v818 = vpop.f32.mrf.mxu0
        %v819 = vadd.f32 %v297, %v818
        %820 = vdwg.mxu0
        %821 = vmatprep.subr.bf16.mxu0 0
        %822 = vmatpush1.bf16.msra.mxu0 0
        %823 = vmatprep.subr.bf16.mxu0 0
        %824 = vmatpush1.bf16.msra.mxu0 0
        %825 = vmatprep.subr.bf16.mxu0 0
        %826 = vmatpush1.bf16.msra.mxu0 0
        %827 = vmatprep.subr.bf16.mxu0 0
        %828 = vmatpush1.bf16.msra.mxu0 0
        %829 = vmatprep.subr.bf16.mxu0 0
        %830 = vmatpush1.bf16.msra.mxu0 0
        %831 = vmatprep.subr.bf16.mxu0 0
        %832 = vmatpush1.bf16.msra.mxu0 0
        %833 = vmatprep.subr.bf16.mxu0 %v488
        %834 = vmatpush1.bf16.msra.mxu0 %v487
        %835 = vmatprep.subr.bf16.mxu0 %v464
        %836 = vmatpush1.bf16.msra.mxu0 %v463
        %837 = vmatprep.subr.bf16.mxu0 0
        %838 = vmatpush2.bf16.msra.mxu0 0
        %839 = vmatprep.subr.bf16.mxu0 0
        %840 = vmatpush2.bf16.msra.mxu0 0
        %841 = vmatprep.subr.bf16.mxu0 0
        %842 = vmatpush2.bf16.msra.mxu0 0
        %843 = vmatprep.subr.bf16.mxu0 0
        %844 = vmatpush2.bf16.msra.mxu0 0
        %845 = vmatprep.subr.bf16.mxu0 0
        %846 = vmatpush2.bf16.msra.mxu0 0
        %847 = vmatprep.subr.bf16.mxu0 0
        %848 = vmatpush2.bf16.msra.mxu0 0
        %849 = vmatprep.subr.bf16.mxu0 0
        %850 = vmatpush2.bf16.msra.mxu0 0
        %851 = vmatprep.subr.bf16.mxu0 0
        %852 = vmatpush2.bf16.msra.mxu0 0
        %853 = vmatprep.mubr.bf16.mxu0 0
        %854 = vmatmul.mubr.bf16.gmra.mxu0 %v551
        %v855 = vpop.f32.mrf.mxu0
        %v856 = vadd.f32 %v282, %v855
        %v857 = vpop.f32.mrf.mxu0
        %v858 = vadd.f32 %v282, %v857
        %v859 = vpop.f32.mrf.mxu0
        %v860 = vadd.f32 %v287, %v859
        %v861 = vpop.f32.mrf.mxu0
        %v862 = vadd.f32 %v287, %v861
        %863 = vmatprep.mubr.bf16.mxu0 0
        %864 = vmatmul.mubr.bf16.gmra.mxu0 %v554
        %v865 = vpop.f32.mrf.mxu0
        %v866 = vadd.f32 %v292, %v865
        %v867 = vpop.f32.mrf.mxu0
        %v868 = vadd.f32 %v292, %v867
        %v869 = vpop.f32.mrf.mxu0
        %v870 = vadd.f32 %v297, %v869
        %v871 = vpop.f32.mrf.mxu0
        %v872 = vadd.f32 %v297, %v871
        %873 = vdwg.mxu0
        %874 = vmatprep.subr.bf16.mxu0 0
        %875 = vmatpush1.bf16.msra.mxu0 0
        %876 = vmatprep.subr.bf16.mxu0 0
        %877 = vmatpush1.bf16.msra.mxu0 0
        %878 = vmatprep.subr.bf16.mxu0 0
        %879 = vmatpush1.bf16.msra.mxu0 0
        %880 = vmatprep.subr.bf16.mxu0 0
        %881 = vmatpush1.bf16.msra.mxu0 0
        %882 = vmatprep.subr.bf16.mxu0 0
        %883 = vmatpush1.bf16.msra.mxu0 0
        %884 = vmatprep.subr.bf16.mxu0 0
        %885 = vmatpush1.bf16.msra.mxu0 0
        %886 = vmatprep.subr.bf16.mxu0 %v490
        %887 = vmatpush1.bf16.msra.mxu0 %v489
        %888 = vmatprep.subr.bf16.mxu0 %v466
        %889 = vmatpush1.bf16.msra.mxu0 %v465
        %890 = vmatprep.subr.bf16.mxu0 0
        %891 = vmatpush2.bf16.msra.mxu0 0
        %892 = vmatprep.subr.bf16.mxu0 0
        %893 = vmatpush2.bf16.msra.mxu0 0
        %894 = vmatprep.subr.bf16.mxu0 0
        %895 = vmatpush2.bf16.msra.mxu0 0
        %896 = vmatprep.subr.bf16.mxu0 0
        %897 = vmatpush2.bf16.msra.mxu0 0
        %898 = vmatprep.subr.bf16.mxu0 0
        %899 = vmatpush2.bf16.msra.mxu0 0
        %900 = vmatprep.subr.bf16.mxu0 0
        %901 = vmatpush2.bf16.msra.mxu0 0
        %902 = vmatprep.subr.bf16.mxu0 0
        %903 = vmatpush2.bf16.msra.mxu0 0
        %904 = vmatprep.subr.bf16.mxu0 0
        %905 = vmatpush2.bf16.msra.mxu0 0
        %906 = vmatprep.mubr.bf16.mxu0 0
        %907 = vmatmul.mubr.bf16.gmra.mxu0 %v551
        %v908 = vpop.f32.mrf.mxu0
        %v909 = vadd.f32 %v282, %v908
        %v910 = vpop.f32.mrf.mxu0
        %v911 = vadd.f32 %v282, %v910
        %v912 = vpop.f32.mrf.mxu0
        %v913 = vadd.f32 %v287, %v912
        %v914 = vpop.f32.mrf.mxu0
        %v915 = vadd.f32 %v287, %v914
        %916 = vmatprep.mubr.bf16.mxu0 0
        %917 = vmatmul.mubr.bf16.gmra.mxu0 %v554
        %v918 = vpop.f32.mrf.mxu0
        %v919 = vadd.f32 %v292, %v918
        %v920 = vpop.f32.mrf.mxu0
        %v921 = vadd.f32 %v292, %v920
        %v922 = vpop.f32.mrf.mxu0
        %v923 = vadd.f32 %v297, %v922
        %v924 = vpop.f32.mrf.mxu0
        %v925 = vadd.f32 %v297, %v924
        %926 = vdwg.mxu0
        %927 = vmatprep.subr.bf16.mxu0 0
        %928 = vmatpush1.bf16.msra.mxu0 0
        %929 = vmatprep.subr.bf16.mxu0 0
        %930 = vmatpush1.bf16.msra.mxu0 0
        %931 = vmatprep.subr.bf16.mxu0 0
        %932 = vmatpush1.bf16.msra.mxu0 0
        %933 = vmatprep.subr.bf16.mxu0 0
        %934 = vmatpush1.bf16.msra.mxu0 0
        %935 = vmatprep.subr.bf16.mxu0 0
        %936 = vmatpush1.bf16.msra.mxu0 0
        %937 = vmatprep.subr.bf16.mxu0 0
        %938 = vmatpush1.bf16.msra.mxu0 0
        %939 = vmatprep.subr.bf16.mxu0 %v492
        %940 = vmatpush1.bf16.msra.mxu0 %v491
        %941 = vmatprep.subr.bf16.mxu0 %v468
        %942 = vmatpush1.bf16.msra.mxu0 %v467
        %943 = vmatprep.subr.bf16.mxu0 0
        %944 = vmatpush2.bf16.msra.mxu0 0
        %945 = vmatprep.subr.bf16.mxu0 0
        %946 = vmatpush2.bf16.msra.mxu0 0
        %947 = vmatprep.subr.bf16.mxu0 0
        %948 = vmatpush2.bf16.msra.mxu0 0
        %949 = vmatprep.subr.bf16.mxu0 0
        %950 = vmatpush2.bf16.msra.mxu0 0
        %951 = vmatprep.subr.bf16.mxu0 0
        %952 = vmatpush2.bf16.msra.mxu0 0
        %953 = vmatprep.subr.bf16.mxu0 0
        %954 = vmatpush2.bf16.msra.mxu0 0
        %955 = vmatprep.subr.bf16.mxu0 0
        %956 = vmatpush2.bf16.msra.mxu0 0
        %957 = vmatprep.subr.bf16.mxu0 0
        %958 = vmatpush2.bf16.msra.mxu0 0
        %959 = vmatprep.mubr.bf16.mxu0 0
        %960 = vmatmul.mubr.bf16.gmra.mxu0 %v551
        %v961 = vpop.f32.mrf.mxu0
        %v962 = vadd.f32 %v282, %v961
        %v963 = vpop.f32.mrf.mxu0
        %v964 = vadd.f32 %v282, %v963
        %v965 = vpop.f32.mrf.mxu0
        %v966 = vadd.f32 %v287, %v965
        %v967 = vpop.f32.mrf.mxu0
        %v968 = vadd.f32 %v287, %v967
        %969 = vmatprep.mubr.bf16.mxu0 0
        %970 = vmatmul.mubr.bf16.gmra.mxu0 %v554
        %v971 = vpop.f32.mrf.mxu0
        %v972 = vadd.f32 %v292, %v971
        %v973 = vpop.f32.mrf.mxu0
        %v974 = vadd.f32 %v292, %v973
        %v975 = vpop.f32.mrf.mxu0
        %v976 = vadd.f32 %v297, %v975
        %v977 = vpop.f32.mrf.mxu0
        %v978 = vadd.f32 %v297, %v977
        %979 = vdwg.mxu0
        %980 = vmatprep.subr.bf16.mxu0 0
        %981 = vmatpush1.bf16.msra.mxu0 0
        %982 = vmatprep.subr.bf16.mxu0 0
        %983 = vmatpush1.bf16.msra.mxu0 0
        %984 = vmatprep.subr.bf16.mxu0 0
        %985 = vmatpush1.bf16.msra.mxu0 0
        %986 = vmatprep.subr.bf16.mxu0 0
        %987 = vmatpush1.bf16.msra.mxu0 0
        %988 = vmatprep.subr.bf16.mxu0 0
        %989 = vmatpush1.bf16.msra.mxu0 0
        %990 = vmatprep.subr.bf16.mxu0 0
        %991 = vmatpush1.bf16.msra.mxu0 0
        %992 = vmatprep.subr.bf16.mxu0 %v494
        %993 = vmatpush1.bf16.msra.mxu0 %v493
        %994 = vmatprep.subr.bf16.mxu0 %v470
        %995 = vmatpush1.bf16.msra.mxu0 %v469
        %996 = vmatprep.subr.bf16.mxu0 0
        %997 = vmatpush2.bf16.msra.mxu0 0
        %998 = vmatprep.subr.bf16.mxu0 0
        %999 = vmatpush2.bf16.msra.mxu0 0
        %1000 = vmatprep.subr.bf16.mxu0 0
        %1001 = vmatpush2.bf16.msra.mxu0 0
        %1002 = vmatprep.subr.bf16.mxu0 0
        %1003 = vmatpush2.bf16.msra.mxu0 0
        %1004 = vmatprep.subr.bf16.mxu0 0
        %1005 = vmatpush2.bf16.msra.mxu0 0
        %1006 = vmatprep.subr.bf16.mxu0 0
        %1007 = vmatpush2.bf16.msra.mxu0 0
        %1008 = vmatprep.subr.bf16.mxu0 0
        %1009 = vmatpush2.bf16.msra.mxu0 0
        %1010 = vmatprep.subr.bf16.mxu0 0
        %1011 = vmatpush2.bf16.msra.mxu0 0
        %1012 = vmatprep.mubr.bf16.mxu0 0
        %1013 = vmatmul.mubr.bf16.gmra.mxu0 %v551
        %v1014 = vpop.f32.mrf.mxu0
        %v1015 = vadd.f32 %v282, %v1014
        %v1016 = vpop.f32.mrf.mxu0
        %v1017 = vadd.f32 %v282, %v1016
        %v1018 = vpop.f32.mrf.mxu0
        %v1019 = vadd.f32 %v287, %v1018
        %v1020 = vpop.f32.mrf.mxu0
        %v1021 = vadd.f32 %v287, %v1020
        %1022 = vmatprep.mubr.bf16.mxu0 0
        %1023 = vmatmul.mubr.bf16.gmra.mxu0 %v554
        %v1024 = vpop.f32.mrf.mxu0
        %v1025 = vadd.f32 %v292, %v1024
        %v1026 = vpop.f32.mrf.mxu0
        %v1027 = vadd.f32 %v292, %v1026
        %v1028 = vpop.f32.mrf.mxu0
        %v1029 = vadd.f32 %v297, %v1028
        %v1030 = vpop.f32.mrf.mxu0
        %v1031 = vadd.f32 %v297, %v1030
        %1032 = vdwg.mxu0
        %1033 = vmatprep.subr.bf16.mxu0 0
        %1034 = vmatpush1.bf16.msra.mxu0 0
        %1035 = vmatprep.subr.bf16.mxu0 0
        %1036 = vmatpush1.bf16.msra.mxu0 0
        %1037 = vmatprep.subr.bf16.mxu0 0
        %1038 = vmatpush1.bf16.msra.mxu0 0
        %1039 = vmatprep.subr.bf16.mxu0 0
        %1040 = vmatpush1.bf16.msra.mxu0 0
        %1041 = vmatprep.subr.bf16.mxu0 0
        %1042 = vmatpush1.bf16.msra.mxu0 0
        %1043 = vmatprep.subr.bf16.mxu0 0
        %1044 = vmatpush1.bf16.msra.mxu0 0
        %1045 = vmatprep.subr.bf16.mxu0 %v496
        %1046 = vmatpush1.bf16.msra.mxu0 %v495
        %1047 = vmatprep.subr.bf16.mxu0 %v472
        %1048 = vmatpush1.bf16.msra.mxu0 %v471
        %1049 = vmatprep.subr.bf16.mxu0 0
        %1050 = vmatpush2.bf16.msra.mxu0 0
        %1051 = vmatprep.subr.bf16.mxu0 0
        %1052 = vmatpush2.bf16.msra.mxu0 0
        %1053 = vmatprep.subr.bf16.mxu0 0
        %1054 = vmatpush2.bf16.msra.mxu0 0
        %1055 = vmatprep.subr.bf16.mxu0 0
        %1056 = vmatpush2.bf16.msra.mxu0 0
        %1057 = vmatprep.subr.bf16.mxu0 0
        %1058 = vmatpush2.bf16.msra.mxu0 0
        %1059 = vmatprep.subr.bf16.mxu0 0
        %1060 = vmatpush2.bf16.msra.mxu0 0
        %1061 = vmatprep.subr.bf16.mxu0 0
        %1062 = vmatpush2.bf16.msra.mxu0 0
        %1063 = vmatprep.subr.bf16.mxu0 0
        %1064 = vmatpush2.bf16.msra.mxu0 0
        %1065 = vmatprep.mubr.bf16.mxu0 0
        %1066 = vmatmul.mubr.bf16.gmra.mxu0 %v551
        %v1067 = vpop.f32.mrf.mxu0
        %v1068 = vadd.f32 %v282, %v1067
        %v1069 = vpop.f32.mrf.mxu0
        %v1070 = vadd.f32 %v282, %v1069
        %v1071 = vpop.f32.mrf.mxu0
        %v1072 = vadd.f32 %v287, %v1071
        %v1073 = vpop.f32.mrf.mxu0
        %v1074 = vadd.f32 %v287, %v1073
        %1075 = vmatprep.mubr.bf16.mxu0 0
        %1076 = vmatmul.mubr.bf16.gmra.mxu0 %v554
        %v1077 = vpop.f32.mrf.mxu0
        %v1078 = vadd.f32 %v292, %v1077
        %v1079 = vpop.f32.mrf.mxu0
        %v1080 = vadd.f32 %v292, %v1079
        %v1081 = vpop.f32.mrf.mxu0
        %v1082 = vadd.f32 %v297, %v1081
        %v1083 = vpop.f32.mrf.mxu0
        %v1084 = vadd.f32 %v297, %v1083
        %1085 = vdwg.mxu0
        %1086 = vmatprep.subr.bf16.mxu0 0
        %1087 = vmatpush1.bf16.msra.mxu0 0
        %1088 = vmatprep.subr.bf16.mxu0 0
        %1089 = vmatpush1.bf16.msra.mxu0 0
        %1090 = vmatprep.subr.bf16.mxu0 0
        %1091 = vmatpush1.bf16.msra.mxu0 0
        %1092 = vmatprep.subr.bf16.mxu0 0
        %1093 = vmatpush1.bf16.msra.mxu0 0
        %1094 = vmatprep.subr.bf16.mxu0 0
        %1095 = vmatpush1.bf16.msra.mxu0 0
        %1096 = vmatprep.subr.bf16.mxu0 0
        %1097 = vmatpush1.bf16.msra.mxu0 0
        %1098 = vmatprep.subr.bf16.mxu0 %v498
        %1099 = vmatpush1.bf16.msra.mxu0 %v497
        %1100 = vmatprep.subr.bf16.mxu0 %v474
        %1101 = vmatpush1.bf16.msra.mxu0 %v473
        %1102 = vmatprep.subr.bf16.mxu0 0
        %1103 = vmatpush2.bf16.msra.mxu0 0
        %1104 = vmatprep.subr.bf16.mxu0 0
        %1105 = vmatpush2.bf16.msra.mxu0 0
        %1106 = vmatprep.subr.bf16.mxu0 0
        %1107 = vmatpush2.bf16.msra.mxu0 0
        %1108 = vmatprep.subr.bf16.mxu0 0
        %1109 = vmatpush2.bf16.msra.mxu0 0
        %1110 = vmatprep.subr.bf16.mxu0 0
        %1111 = vmatpush2.bf16.msra.mxu0 0
        %1112 = vmatprep.subr.bf16.mxu0 0
        %1113 = vmatpush2.bf16.msra.mxu0 0
        %1114 = vmatprep.subr.bf16.mxu0 0
        %1115 = vmatpush2.bf16.msra.mxu0 0
        %1116 = vmatprep.subr.bf16.mxu0 0
        %1117 = vmatpush2.bf16.msra.mxu0 0
        %1118 = vmatprep.mubr.bf16.mxu0 0
        %1119 = vmatmul.mubr.bf16.gmra.mxu0 %v551
        %v1120 = vpop.f32.mrf.mxu0
        %v1121 = vadd.f32 %v282, %v1120
        %v1122 = vpop.f32.mrf.mxu0
        %v1123 = vadd.f32 %v282, %v1122
        %v1124 = vpop.f32.mrf.mxu0
        %v1125 = vadd.f32 %v287, %v1124
        %v1126 = vpop.f32.mrf.mxu0
        %v1127 = vadd.f32 %v287, %v1126
        %1128 = vmatprep.mubr.bf16.mxu0 0
        %1129 = vmatmul.mubr.bf16.gmra.mxu0 %v554
        %v1130 = vpop.f32.mrf.mxu0
        %v1131 = vadd.f32 %v292, %v1130
        %v1132 = vpop.f32.mrf.mxu0
        %v1133 = vadd.f32 %v292, %v1132
        %v1134 = vpop.f32.mrf.mxu0
        %v1135 = vadd.f32 %v297, %v1134
        %v1136 = vpop.f32.mrf.mxu0
        %v1137 = vadd.f32 %v297, %v1136
        %1138 = vdwg.mxu0
        %1139 = vmatprep.subr.bf16.mxu0 0
        %1140 = vmatpush1.bf16.msra.mxu0 0
        %1141 = vmatprep.subr.bf16.mxu0 0
        %1142 = vmatpush1.bf16.msra.mxu0 0
        %1143 = vmatprep.subr.bf16.mxu0 0
        %1144 = vmatpush1.bf16.msra.mxu0 0
        %1145 = vmatprep.subr.bf16.mxu0 0
        %1146 = vmatpush1.bf16.msra.mxu0 0
        %1147 = vmatprep.subr.bf16.mxu0 0
        %1148 = vmatpush1.bf16.msra.mxu0 0
        %1149 = vmatprep.subr.bf16.mxu0 0
        %1150 = vmatpush1.bf16.msra.mxu0 0
        %1151 = vmatprep.subr.bf16.mxu0 %v500
        %1152 = vmatpush1.bf16.msra.mxu0 %v499
        %1153 = vmatprep.subr.bf16.mxu0 %v476
        %1154 = vmatpush1.bf16.msra.mxu0 %v475
        %1155 = vmatprep.subr.bf16.mxu0 0
        %1156 = vmatpush2.bf16.msra.mxu0 0
        %1157 = vmatprep.subr.bf16.mxu0 0
        %1158 = vmatpush2.bf16.msra.mxu0 0
        %1159 = vmatprep.subr.bf16.mxu0 0
        %1160 = vmatpush2.bf16.msra.mxu0 0
        %1161 = vmatprep.subr.bf16.mxu0 0
        %1162 = vmatpush2.bf16.msra.mxu0 0
        %1163 = vmatprep.subr.bf16.mxu0 0
        %1164 = vmatpush2.bf16.msra.mxu0 0
        %1165 = vmatprep.subr.bf16.mxu0 0
        %1166 = vmatpush2.bf16.msra.mxu0 0
        %1167 = vmatprep.subr.bf16.mxu0 0
        %1168 = vmatpush2.bf16.msra.mxu0 0
        %1169 = vmatprep.subr.bf16.mxu0 0
        %1170 = vmatpush2.bf16.msra.mxu0 0
        %1171 = vmatprep.mubr.bf16.mxu0 0
        %1172 = vmatmul.mubr.bf16.gmra.mxu0 %v551
        %v1173 = vpop.f32.mrf.mxu0
        %v1174 = vadd.f32 %v282, %v1173
        %v1175 = vpop.f32.mrf.mxu0
        %v1176 = vadd.f32 %v282, %v1175
        %v1177 = vpop.f32.mrf.mxu0
        %v1178 = vadd.f32 %v287, %v1177
        %v1179 = vpop.f32.mrf.mxu0
        %v1180 = vadd.f32 %v287, %v1179
        %1181 = vmatprep.mubr.bf16.mxu0 0
        %1182 = vmatmul.mubr.bf16.gmra.mxu0 %v554
        %v1183 = vpop.f32.mrf.mxu0
        %v1184 = vadd.f32 %v292, %v1183
        %v1185 = vpop.f32.mrf.mxu0
        %v1186 = vadd.f32 %v292, %v1185
        %v1187 = vpop.f32.mrf.mxu0
        %v1188 = vadd.f32 %v297, %v1187
        %v1189 = vpop.f32.mrf.mxu0
        %v1190 = vadd.f32 %v297, %v1189
        %1191 = vdwg.mxu0
        %v1192 = vmax.f32 %v591, 0.0
        %v1193 = vmax.f32 %v593, 0.0
        %v1194 = vmax.f32 %v644, 0.0
        %v1195 = vmax.f32 %v646, 0.0
        %v1196 = vmax.f32 %v697, 0.0
        %v1197 = vmax.f32 %v699, 0.0
        %v1198 = vmax.f32 %v750, 0.0
        %v1199 = vmax.f32 %v752, 0.0
        %v1200 = vmax.f32 %v803, 0.0
        %v1201 = vmax.f32 %v805, 0.0
        %v1202 = vmax.f32 %v856, 0.0
        %v1203 = vmax.f32 %v858, 0.0
        %v1204 = vmax.f32 %v909, 0.0
        %v1205 = vmax.f32 %v911, 0.0
        %v1206 = vmax.f32 %v962, 0.0
        %v1207 = vmax.f32 %v964, 0.0
        %v1208 = vmax.f32 %v1015, 0.0
        %v1209 = vmax.f32 %v1017, 0.0
        %v1210 = vmax.f32 %v1068, 0.0
        %v1211 = vmax.f32 %v1070, 0.0
        %v1212 = vmax.f32 %v1121, 0.0
        %v1213 = vmax.f32 %v1123, 0.0
        %v1214 = vmax.f32 %v1174, 0.0
        %v1215 = vmax.f32 %v1176, 0.0
        %v1216 = vmax.f32 %v595, 0.0
        %v1217 = vmax.f32 %v597, 0.0
        %v1218 = vmax.f32 %v648, 0.0
        %v1219 = vmax.f32 %v650, 0.0
        %v1220 = vmax.f32 %v701, 0.0
        %v1221 = vmax.f32 %v703, 0.0
        %v1222 = vmax.f32 %v754, 0.0
        %v1223 = vmax.f32 %v756, 0.0
        %v1224 = vmax.f32 %v807, 0.0
        %v1225 = vmax.f32 %v809, 0.0
        %v1226 = vmax.f32 %v860, 0.0
        %v1227 = vmax.f32 %v862, 0.0
        %v1228 = vmax.f32 %v913, 0.0
        %v1229 = vmax.f32 %v915, 0.0
        %v1230 = vmax.f32 %v966, 0.0
        %v1231 = vmax.f32 %v968, 0.0
        %v1232 = vmax.f32 %v1019, 0.0
        %v1233 = vmax.f32 %v1021, 0.0
        %v1234 = vmax.f32 %v1072, 0.0
        %v1235 = vmax.f32 %v1074, 0.0
        %v1236 = vmax.f32 %v1125, 0.0
        %v1237 = vmax.f32 %v1127, 0.0
        %v1238 = vmax.f32 %v1178, 0.0
        %v1239 = vmax.f32 %v1180, 0.0
        %v1240 = vmax.f32 %v601, 0.0
        %v1241 = vmax.f32 %v603, 0.0
        %v1242 = vmax.f32 %v654, 0.0
        %v1243 = vmax.f32 %v656, 0.0
        %v1244 = vmax.f32 %v707, 0.0
        %v1245 = vmax.f32 %v709, 0.0
        %v1246 = vmax.f32 %v760, 0.0
        %v1247 = vmax.f32 %v762, 0.0
        %v1248 = vmax.f32 %v813, 0.0
        %v1249 = vmax.f32 %v815, 0.0
        %v1250 = vmax.f32 %v866, 0.0
        %v1251 = vmax.f32 %v868, 0.0
        %v1252 = vmax.f32 %v919, 0.0
        %v1253 = vmax.f32 %v921, 0.0
        %v1254 = vmax.f32 %v972, 0.0
        %v1255 = vmax.f32 %v974, 0.0
        %v1256 = vmax.f32 %v1025, 0.0
        %v1257 = vmax.f32 %v1027, 0.0
        %v1258 = vmax.f32 %v1078, 0.0
        %v1259 = vmax.f32 %v1080, 0.0
        %v1260 = vmax.f32 %v1131, 0.0
        %v1261 = vmax.f32 %v1133, 0.0
        %v1262 = vmax.f32 %v1184, 0.0
        %v1263 = vmax.f32 %v1186, 0.0
        %v1264 = vmax.f32 %v605, 0.0
        %v1265 = vmax.f32 %v607, 0.0
        %v1266 = vmax.f32 %v658, 0.0
        %v1267 = vmax.f32 %v660, 0.0
        %v1268 = vmax.f32 %v711, 0.0
        %v1269 = vmax.f32 %v713, 0.0
        %v1270 = vmax.f32 %v764, 0.0
        %v1271 = vmax.f32 %v766, 0.0
        %v1272 = vmax.f32 %v817, 0.0
        %v1273 = vmax.f32 %v819, 0.0
        %v1274 = vmax.f32 %v870, 0.0
        %v1275 = vmax.f32 %v872, 0.0
        %v1276 = vmax.f32 %v923, 0.0
        %v1277 = vmax.f32 %v925, 0.0
        %v1278 = vmax.f32 %v976, 0.0
        %v1279 = vmax.f32 %v978, 0.0
        %v1280 = vmax.f32 %v1029, 0.0
        %v1281 = vmax.f32 %v1031, 0.0
        %v1282 = vmax.f32 %v1082, 0.0
        %v1283 = vmax.f32 %v1084, 0.0
        %v1284 = vmax.f32 %v1135, 0.0
        %v1285 = vmax.f32 %v1137, 0.0
        %v1286 = vmax.f32 %v1188, 0.0
        %v1287 = vmax.f32 %v1190, 0.0
        %v1288 = vmax.f32 %v1192, %v1194
        %v1289 = vmax.f32 %v1193, %v1195
        %v1290 = vmax.f32 %v1216, %v1218
        %v1291 = vmax.f32 %v1217, %v1219
        %v1292 = vmax.f32 %v1240, %v1242
        %v1293 = vmax.f32 %v1241, %v1243
        %v1294 = vmax.f32 %v1264, %v1266
        %v1295 = vmax.f32 %v1265, %v1267
        %v1296 = vmax.f32 %v1196, %v1198
        %v1297 = vmax.f32 %v1197, %v1199
        %v1298 = vmax.f32 %v1220, %v1222
        %v1299 = vmax.f32 %v1221, %v1223
        %v1300 = vmax.f32 %v1244, %v1246
        %v1301 = vmax.f32 %v1245, %v1247
        %v1302 = vmax.f32 %v1268, %v1270
        %v1303 = vmax.f32 %v1269, %v1271
        %v1304 = vmax.f32 %v1200, %v1202
        %v1305 = vmax.f32 %v1201, %v1203
        %v1306 = vmax.f32 %v1224, %v1226
        %v1307 = vmax.f32 %v1225, %v1227
        %v1308 = vmax.f32 %v1248, %v1250
        %v1309 = vmax.f32 %v1249, %v1251
        %v1310 = vmax.f32 %v1272, %v1274
        %v1311 = vmax.f32 %v1273, %v1275
        %v1312 = vmax.f32 %v1204, %v1206
        %v1313 = vmax.f32 %v1205, %v1207
        %v1314 = vmax.f32 %v1228, %v1230
        %v1315 = vmax.f32 %v1229, %v1231
        %v1316 = vmax.f32 %v1252, %v1254
        %v1317 = vmax.f32 %v1253, %v1255
        %v1318 = vmax.f32 %v1276, %v1278
        %v1319 = vmax.f32 %v1277, %v1279
        %v1320 = vmax.f32 %v1208, %v1210
        %v1321 = vmax.f32 %v1209, %v1211
        %v1322 = vmax.f32 %v1232, %v1234
        %v1323 = vmax.f32 %v1233, %v1235
        %v1324 = vmax.f32 %v1256, %v1258
        %v1325 = vmax.f32 %v1257, %v1259
        %v1326 = vmax.f32 %v1280, %v1282
        %v1327 = vmax.f32 %v1281, %v1283
        %v1328 = vmax.f32 %v1212, %v1214
        %v1329 = vmax.f32 %v1213, %v1215
        %v1330 = vmax.f32 %v1236, %v1238
        %v1331 = vmax.f32 %v1237, %v1239
        %v1332 = vmax.f32 %v1260, %v1262
        %v1333 = vmax.f32 %v1261, %v1263
        %v1334 = vmax.f32 %v1284, %v1286
        %v1335 = vmax.f32 %v1285, %v1287
        %v1336 = vmax.f32 %v1288, %v1296
        %v1337 = vmax.f32 %v1289, %v1297
        %v1338 = vmax.f32 %v1290, %v1298
        %v1339 = vmax.f32 %v1291, %v1299
        %v1340 = vmax.f32 %v1292, %v1300
        %v1341 = vmax.f32 %v1293, %v1301
        %v1342 = vmax.f32 %v1294, %v1302
        %v1343 = vmax.f32 %v1295, %v1303
        %v1344 = vmax.f32 %v1304, %v1312
        %v1345 = vmax.f32 %v1305, %v1313
        %v1346 = vmax.f32 %v1306, %v1314
        %v1347 = vmax.f32 %v1307, %v1315
        %v1348 = vmax.f32 %v1308, %v1316
        %v1349 = vmax.f32 %v1309, %v1317
        %v1350 = vmax.f32 %v1310, %v1318
        %v1351 = vmax.f32 %v1311, %v1319
        %v1352 = vmax.f32 %v1320, %v1328
        %v1353 = vmax.f32 %v1321, %v1329
        %v1354 = vmax.f32 %v1322, %v1330
        %v1355 = vmax.f32 %v1323, %v1331
        %v1356 = vmax.f32 %v1324, %v1332
        %v1357 = vmax.f32 %v1325, %v1333
        %v1358 = vmax.f32 %v1326, %v1334
        %v1359 = vmax.f32 %v1327, %v1335
        %v1360 = vmax.f32 %v1336, %v1344
        %v1361 = vmax.f32 %v1337, %v1345
        %v1362 = vmax.f32 %v1338, %v1346
        %v1363 = vmax.f32 %v1339, %v1347
        %v1364 = vmax.f32 %v1340, %v1348
        %v1365 = vmax.f32 %v1341, %v1349
        %v1366 = vmax.f32 %v1342, %v1350
        %v1367 = vmax.f32 %v1343, %v1351
        %v1368 = vmax.f32 %v1360, %v1352
        %v1369 = vmax.f32 %v1361, %v1353
        %v1370 = vmax.f32 %v1362, %v1354
        %v1371 = vmax.f32 %v1363, %v1355
        %v1372 = vmax.f32 %v1364, %v1356
        %v1373 = vmax.f32 %v1365, %v1357
        %v1374 = vmax.f32 %v1366, %v1358
        %v1375 = vmax.f32 %v1367, %v1359
        %v1376 = vld [vmem:[%s3] sm:$0xff]
        %v1377 = vld [vmem:[%s3 + $0x8] sm:$0xff]
        %v1378 = vld [vmem:[%s3 + $0x10] sm:$0xff]
        %v1379 = vld [vmem:[%s3 + $0x18] sm:$0xff]
        %v1380 = vld [vmem:[%s4] sm:$0x1]
        %v1381 = vadd.f32 %v1368, %v1369
        %1382 = vadd.xlane.f32.xlu0 %v1381
        %v1383 = vpop.xlane.xlu0 %1382
        %v1384 = vadd.f32 %v1370, %v1371
        %1385 = vadd.xlane.f32.xlu0 %v1384
        %v1386 = vpop.xlane.xlu0 %1385
        %v1387 = vadd.f32 %v1372, %v1373
        %1388 = vadd.xlane.f32.xlu0 %v1387
        %v1389 = vpop.xlane.xlu0 %1388
        %v1390 = vadd.f32 %v1374, %v1375
        %1391 = vadd.xlane.f32.xlu0 %v1390
        %v1392 = vpop.xlane.xlu0 %1391
        %v1393 = vmul.f32 %v1383, 0.00390625
        %v1394 = vmul.f32 %v1386, 0.00390625
        %v1395 = vmul.f32 %v1389, 0.00390625
        %v1396 = vmul.f32 %v1392, 0.00390625
        %v1397 = vmul.f32 %v1376, %v1393
        %v1398 = vmul.f32 %v1377, %v1394
        %v1399 = vmul.f32 %v1378, %v1395
        %v1400 = vmul.f32 %v1379, %v1396
        %v1401 = vadd.f32 %v1397, %v1398
        %v1402 = vadd.f32 %v1401, %v1399
        %v1403 = vadd.f32 %v1402, %v1400
        %v1404 = vrot.slane %v1403, 4
        %v1405 = vadd.f32 %v1403, %v1404
        %v1406 = vrot.slane %v1405, 2
        %v1407 = vadd.f32 %v1405, %v1406
        %v1408 = vrot.slane %v1407, 1
        %v1409 = vadd.f32 %v1407, %v1408
        %v1410 = vadd.f32 %v1409, %v1380
        %1411 = vst [vmem:[%s216] sm:$0x1] %v1410
        %s1412 = sand.u32 %s137, 1
        %s1413 = scalar_lea.sflag [#allocation3], %s1412
        %s1414 = sand.u32 %s137, 1
        %s1415 = scalar_lea.vmem [#allocation2], %s1414
        // Predicated region
        $region41: #{mcnn_forward.1} parent=39 // pred_check
          %p1416 = pneg %p147
        $region42: #{mcnn_forward.1} parent=39 // pred_check_branch
          %1418 = sbr.rel (%p1416) target = $region44
        $region43: #{mcnn_forward.1} parent=39 // pred_region
          %s1420 = ssub.s32 16, 16
          %1421 = vsyncadd %s1413, %s1420
          %s1422 = smul.addr %s19, 16
          %s1423 = scalar_lea.hbm %s5, %s1422
          %s1425 = sshll.u32 %s1415, 4
          %s1426 = int_to_ptr.vmem [resolvable:$true] %s1425
          %1428 = dma.vmem_to_hbm [thread:$0]  %s1426, 16, %s1423, %s1413
        $region44: #{mcnn_forward.1} parent=39 // pred_fallthru
          _
      $region40: #{mcnn_forward.1} parent=5 // pred_fallthru
        _
      %p1429 = scmp.le.s32.totalorder 2, %s14
      // Predicated region
      $region45: #{mcnn_forward.1} parent=5 // pred_check
        %p1430 = pneg %p1429
      $region46: #{mcnn_forward.1} parent=5 // pred_check_branch
        %1432 = sbr.rel (%p1430) target = $region48
      $region47: #{mcnn_forward.1} parent=5 // pred_region
        %s1433 = ssub.s32 %s14, 2
        // Predicated region
        $region49: #{mcnn_forward.1} parent=47 // pred_check
          %p1434 = pneg %p153
        $region50: #{mcnn_forward.1} parent=47 // pred_check_branch
          %1436 = sbr.rel (%p1434) target = $region52
        $region51: #{mcnn_forward.1} parent=47 // pred_region
          %s1437 = sand.u32 %s138, 1
          %s1438 = scalar_lea.sflag [#allocation3], %s1437
          %s1439 = sand.u32 %s138, 1
          %s1440 = scalar_lea.vmem [#allocation2], %s1439
          %1441 = dma.done %s1438, 16
        $region52: #{mcnn_forward.1} parent=47 // pred_fallthru
          _
      $region48: #{mcnn_forward.1} parent=5 // pred_fallthru
        _
    $region6: #{mcnn_forward.1} parent=1 // loop_footer
      %s18 = sadd.s32 1, %s14
    $region7: #{mcnn_forward.1} parent=1 // loop_footer_branch
      %13 = sbr.rel target = $region3
    $region8: #{mcnn_forward.1} parent=1 // loop_exit
      _
    %1442 = vsyncpa [#allocation3], 1
    %s1443 = scalar_lea.sflag [#allocation3], 1
    %1444 = vsyncpa %s1443, 1

</llo_original>
